<compile_context>
chip_gen: v7x
topology: tpu7x:2x2x1
jax: 0.10.0
libtpu: 0.0.40
codegen_flags: <defaults>
</compile_context>

<pallas_src>
import functools

import jax
import jax.numpy as jnp
from jax.experimental import pallas as pl
from jax.experimental.pallas import tpu as pltpu


def _round_up(n, m):
    return ((n + m - 1) // m) * m


# ~0.35 us per grid step; at ~576 B/row of HBM traffic that's worth ~600 rows.
_STEP_OVERHEAD_ROWS = 600


def _pick_batch_tile(batch, block_batch):
    """Pick a bf16-friendly (multiple of 16) batch tile.

    Balances padding waste against per-step overhead, and prefers >=2 grid
    steps for large batches so v7x's two TensorCores both get work.
    """
    b16 = _round_up(max(batch, 1), 16)
    if b16 <= block_batch:
        # Whole batch fits in one tile.  Split in two for megacore when the
        # batch is big enough that the extra grid step is cheap.
        if b16 >= 512:
            return _round_up((b16 + 1) // 2, 16)
        return b16
    candidates = [c for c in (256, 512, 1024, 2048, 4096) if c <= block_batch]
    if not candidates:
        candidates = [_round_up(block_batch, 16)]
    best_tb, best_cost = None, None
    for tb in candidates:
        padded = _round_up(batch, tb)
        steps = padded // tb
        cost = padded + steps * _STEP_OVERHEAD_ROWS  # dead rows + step overhead
        key = (cost, -tb)
        if best_cost is None or key < best_cost:
            best_cost, best_tb = key, tb
    return best_tb


def game_network_kernel(x_ref, w1_ref, b1_ref, w2_ref, b2_ref, wh_ref, bh_ref,
                        out_ref, *, policy_dim):
    # feature_extractor: Linear -> ReLU -> Linear -> ReLU
    # x arrives f32 (no wrapper-side cast pass); cast to bf16 for the MXU.
    x = x_ref[...].astype(jnp.bfloat16)
    h1 = jnp.dot(x, w1_ref[...], preferred_element_type=jnp.float32) + b1_ref[...]
    h1 = jnp.maximum(h1, 0.0).astype(jnp.bfloat16)
    h2 = jnp.dot(h1, w2_ref[...], preferred_element_type=jnp.float32) + b2_ref[...]
    h2 = jnp.maximum(h2, 0.0).astype(jnp.bfloat16)

    # fused heads: one lane-dense matmul -> [TB, 128] slab
    logits = jnp.dot(h2, wh_ref[...], preferred_element_type=jnp.float32) + bh_ref[...]

    tb, out_w = logits.shape
    col = jax.lax.broadcasted_iota(jnp.int32, (tb, out_w), 1)
    is_policy = col < policy_dim

    # masked, max-stabilized softmax over the first `policy_dim` columns.
    # exp(-inf) = 0 handles the masked columns without a second where-pass and
    # is safe even if a value logit exceeds the policy max.
    masked_logits = jnp.where(is_policy, logits, -jnp.inf)
    m = jnp.max(masked_logits, axis=-1, keepdims=True)
    e = jnp.exp(masked_logits - m)
    s = jnp.sum(e, axis=-1, keepdims=True)
    policy = e * pl.reciprocal(s, approx=False)  # full precision: keeps sum==1 @1e-5

    # value head (tanh) lives in column [policy_dim]; padded columns are tanh(0)=0
    out_ref[...] = jnp.where(is_policy, policy, jnp.tanh(logits)).astype(out_ref.dtype)


def prepare_params(params):
    """One-time preprocessing (do NOT re-run per forward):

    * fuse policy|value head weights into a lane-dense, zero-padded
      (hidden, 128) weight + bias, so the heads are one MXU pass and the
      output is a single unmasked 128-lane slab.
    * pre-cast matmul operands to bf16 (f32 biases, added post-accumulation).
    """
    (w1, b1, w2, b2, wp, bp, wv, bv) = params
    hidden_dim = w1.shape[1]
    policy_dim = wp.shape[1]
    value_dim = wv.shape[1]

    out_width = _round_up(policy_dim + value_dim, 128)
    wh = jnp.zeros((hidden_dim, out_width), jnp.float32)
    wh = wh.at[:, :policy_dim].set(wp)
    wh = wh.at[:, policy_dim:policy_dim + value_dim].set(wv)
    bh = jnp.zeros((1, out_width), jnp.float32)
    bh = bh.at[:, :policy_dim].set(bp)
    bh = bh.at[:, policy_dim:policy_dim + value_dim].set(bv)

    arrays = (
        w1.astype(jnp.bfloat16), b1.astype(jnp.float32),
        w2.astype(jnp.bfloat16), b2.astype(jnp.float32),
        wh.astype(jnp.bfloat16), bh.astype(jnp.float32),
    )
    dims = (policy_dim, value_dim, out_width)
    return arrays, dims


def game_network_forward(x, prepared, *, block_batch=2048):
    """x: [batch, input_dim] f32.  `prepared` from prepare_params().
    Returns (policy [batch, policy_dim], value [batch, value_dim])."""
    (w1_bf, b1_f, w2_bf, b2_f, wh_bf, bh_f), (policy_dim, value_dim, out_width) = prepared
    batch, input_dim = x.shape
    hidden_dim = w1_bf.shape[1]

    # --- batch tiling: multiple-of-16 tiles, minimal padding, >=2 steps when big ---
    tb = _pick_batch_tile(batch, block_batch)
    padded_batch = _round_up(batch, tb)
    x_f = x.astype(jnp.float32)
    if padded_batch != batch:
        x_f = jnp.pad(x_f, ((0, padded_batch - batch), (0, 0)))
    grid = (padded_batch // tb,)

    flops = 2 * padded_batch * (input_dim * hidden_dim
                                + hidden_dim * hidden_dim
                                + hidden_dim * out_width)
    transcendentals = padded_batch * 2 * out_width  # exp + tanh over the slab
    bytes_accessed = (x_f.size * 4 + w1_bf.size * 2 + w2_bf.size * 2 + wh_bf.size * 2
                      + b1_f.size * 4 + b2_f.size * 4 + bh_f.size * 4
                      + padded_batch * out_width * 4)

    # TODO(synk): weight BlockSpecs could use pipeline_mode=pl.Buffered(1) to avoid
    # double-buffering if hidden_dim is scaled up; irrelevant at hidden_dim=32.
    out = pl.pallas_call(
        functools.partial(game_network_kernel, policy_dim=policy_dim),
        out_shape=jax.ShapeDtypeStruct((padded_batch, out_width), jnp.float32),
        grid=grid,
        in_specs=[
            pl.BlockSpec((tb, input_dim), lambda i: (i, 0)),          # x (tiled, f32)
            pl.BlockSpec((input_dim, hidden_dim), lambda i: (0, 0)),  # w1 (resident)
            pl.BlockSpec((1, hidden_dim), lambda i: (0, 0)),          # b1
            pl.BlockSpec((hidden_dim, hidden_dim), lambda i: (0, 0)), # w2
            pl.BlockSpec((1, hidden_dim), lambda i: (0, 0)),          # b2
            pl.BlockSpec((hidden_dim, out_width), lambda i: (0, 0)),  # fused head W
            pl.BlockSpec((1, out_width), lambda i: (0, 0)),           # fused head b
        ],
        out_specs=pl.BlockSpec((tb, out_width), lambda i: (i, 0)),
        compiler_params=pltpu.CompilerParams(
            dimension_semantics=("parallel",),
            vmem_limit_bytes=32 * 1024 * 1024,
        ),
        cost_estimate=pl.CostEstimate(
            flops=flops,
            transcendentals=transcendentals,
            bytes_accessed=bytes_accessed,
        ),
    )(x_f, w1_bf, b1_f, w2_bf, b2_f, wh_bf, bh_f)

    policy = out[:batch, :policy_dim]
    value = out[:batch, policy_dim:policy_dim + value_dim]
    return policy, value


def init_params(key, input_dim, hidden_dim, policy_output_dim, value_output_dim=1):
    ks = jax.random.split(key, 8)

    def lin(kw, kb, fan_in, fan_out):
        # deterministic small-scale init, weight stored as (in, out)
        w = jax.random.normal(kw, (fan_in, fan_out), jnp.float32) * 0.1
        b = jax.random.normal(kb, (1, fan_out), jnp.float32) * 0.01
        return w, b

    w1, b1 = lin(ks[0], ks[1], input_dim, hidden_dim)
    w2, b2 = lin(ks[2], ks[3], hidden_dim, hidden_dim)
    wp, bp = lin(ks[4], ks[5], hidden_dim, policy_output_dim)
    wv, bv = lin(ks[6], ks[7], hidden_dim, value_output_dim)
    return (w1, b1, w2, b2, wp, bp, wv, bv)


def reference_forward(x, params):
    """Pure-JAX reference mirroring the kernel's bf16-operand / f32-accumulate path."""
    (w1, b1, w2, b2, wp, bp, wv, bv) = params
    h = x.astype(jnp.bfloat16)
    h = jnp.maximum(jnp.dot(h, w1.astype(jnp.bfloat16),
                            preferred_element_type=jnp.float32) + b1, 0.0)
    h = h.astype(jnp.bfloat16)
    h = jnp.maximum(jnp.dot(h, w2.astype(jnp.bfloat16),
                            preferred_element_type=jnp.float32) + b2, 0.0)
    h = h.astype(jnp.bfloat16)
    p_logits = jnp.dot(h, wp.astype(jnp.bfloat16),
                       preferred_element_type=jnp.float32) + bp
    v_logits = jnp.dot(h, wv.astype(jnp.bfloat16),
                       preferred_element_type=jnp.float32) + bv
    return jax.nn.softmax(p_logits, axis=-1), jnp.tanh(v_logits)


if __name__ == "__main__":
    key = jax.random.PRNGKey(0)
    k_x, k_p = jax.random.split(key)

    batch = 8
    input_dim = 16
    hidden_dim = 32        # HIDDEN_LAYER_SIZE
    policy_output_dim = 9  # e.g. 3x3 board
    value_output_dim = 1

    x = jax.random.normal(k_x, (batch, input_dim), jnp.float32)
    params = init_params(k_p, input_dim, hidden_dim, policy_output_dim, value_output_dim)

    # One-time head fusion + bf16 casts, reused across forward calls.
    prepared = prepare_params(params)

    policy, value = game_network_forward(x, prepared)
    jax.block_until_ready((policy, value))

    ref_policy, ref_value = reference_forward(x, params)
    assert policy.shape == (batch, policy_output_dim)
    assert value.shape == (batch, value_output_dim)
    assert jnp.allclose(policy, ref_policy, atol=1e-3, rtol=1e-3)
    assert jnp.allclose(value, ref_value, atol=1e-3, rtol=1e-3)
    assert jnp.allclose(jnp.sum(policy, axis=-1), 1.0, atol=1e-5)

    print("KERNEL_OK")
</pallas_src>

<mosaic_0001>
module attributes {stable_mosaic.version = 11 : i64} {
  func.func @game_network_kernel(%arg0: i32, %arg1: memref<16x16xf32, #tpu.memory_space<vmem>>, %arg2: memref<16x32xbf16, #tpu.memory_space<vmem>>, %arg3: memref<1x32xf32, #tpu.memory_space<vmem>>, %arg4: memref<32x32xbf16, #tpu.memory_space<vmem>>, %arg5: memref<1x32xf32, #tpu.memory_space<vmem>>, %arg6: memref<32x128xbf16, #tpu.memory_space<vmem>>, %arg7: memref<1x128xf32, #tpu.memory_space<vmem>>, %arg8: memref<16x128xf32, #tpu.memory_space<vmem>>) attributes {dimension_semantics = [#tpu.dimension_semantics<parallel>], iteration_bounds = array<i64: 1>, scalar_prefetch = 0 : i64, scratch_operands = 0 : i64, tpu.core_type = #tpu.core_type<tc>, window_params = [{transform_indices = @transform_0, window_bounds = array<i64: 16, 16>}, {pipeline_mode = #tpu.pipeline_mode<synchronous>, transform_indices = @transform_1, window_bounds = array<i64: 16, 32>}, {pipeline_mode = #tpu.pipeline_mode<synchronous>, transform_indices = @transform_2, window_bounds = array<i64: 1, 32>}, {pipeline_mode = #tpu.pipeline_mode<synchronous>, transform_indices = @transform_3, window_bounds = array<i64: 32, 32>}, {pipeline_mode = #tpu.pipeline_mode<synchronous>, transform_indices = @transform_4, window_bounds = array<i64: 1, 32>}, {pipeline_mode = #tpu.pipeline_mode<synchronous>, transform_indices = @transform_5, window_bounds = array<i64: 32, 128>}, {pipeline_mode = #tpu.pipeline_mode<synchronous>, transform_indices = @transform_6, window_bounds = array<i64: 1, 128>}, {transform_indices = @transform_7, window_bounds = array<i64: 16, 128>}]} {
    %c0 = arith.constant 0 : index
    %c0_0 = arith.constant 0 : index
    %0 = vector.load %arg1[%c0, %c0_0] : memref<16x16xf32, #tpu.memory_space<vmem>>, vector<16x16xf32>
    %1 = arith.truncf %0 : vector<16x16xf32> to vector<16x16xbf16>
    %c0_1 = arith.constant 0 : index
    %c0_2 = arith.constant 0 : index
    %2 = vector.load %arg2[%c0_1, %c0_2] : memref<16x32xbf16, #tpu.memory_space<vmem>>, vector<16x32xbf16>
    %cst = arith.constant dense<0.000000e+00> : vector<16x32xf32>
    %3 = tpu.matmul %1, %2, %cst {dimension_numbers = #tpu.dot_dimension_numbers<[1], [0], [0], [1], [0, 0, 1, 1], [], []>} : vector<16x16xbf16>, vector<16x32xbf16>, vector<16x32xf32> -> vector<16x32xf32>
    %c0_3 = arith.constant 0 : index
    %c0_4 = arith.constant 0 : index
    %4 = vector.load %arg3[%c0_3, %c0_4] : memref<1x32xf32, #tpu.memory_space<vmem>>, vector<1x32xf32>
    %5 = vector.broadcast %4 : vector<1x32xf32> to vector<16x32xf32>
    %6 = arith.addf %3, %5 : vector<16x32xf32>
    %cst_5 = arith.constant 0.000000e+00 : f32
    %7 = vector.broadcast %cst_5 : f32 to vector<16x32xf32>
    %8 = arith.maximumf %6, %7 : vector<16x32xf32>
    %9 = arith.truncf %8 : vector<16x32xf32> to vector<16x32xbf16>
    %c0_6 = arith.constant 0 : index
    %c0_7 = arith.constant 0 : index
    %10 = vector.load %arg4[%c0_6, %c0_7] : memref<32x32xbf16, #tpu.memory_space<vmem>>, vector<32x32xbf16>
    %cst_8 = arith.constant dense<0.000000e+00> : vector<16x32xf32>
    %11 = tpu.matmul %9, %10, %cst_8 {dimension_numbers = #tpu.dot_dimension_numbers<[1], [0], [0], [1], [0, 0, 1, 1], [], []>} : vector<16x32xbf16>, vector<32x32xbf16>, vector<16x32xf32> -> vector<16x32xf32>
    %c0_9 = arith.constant 0 : index
    %c0_10 = arith.constant 0 : index
    %12 = vector.load %arg5[%c0_9, %c0_10] : memref<1x32xf32, #tpu.memory_space<vmem>>, vector<1x32xf32>
    %13 = vector.broadcast %12 : vector<1x32xf32> to vector<16x32xf32>
    %14 = arith.addf %11, %13 : vector<16x32xf32>
    %cst_11 = arith.constant 0.000000e+00 : f32
    %15 = vector.broadcast %cst_11 : f32 to vector<16x32xf32>
    %16 = arith.maximumf %14, %15 : vector<16x32xf32>
    %17 = arith.truncf %16 : vector<16x32xf32> to vector<16x32xbf16>
    %c0_12 = arith.constant 0 : index
    %c0_13 = arith.constant 0 : index
    %18 = vector.load %arg6[%c0_12, %c0_13] : memref<32x128xbf16, #tpu.memory_space<vmem>>, vector<32x128xbf16>
    %cst_14 = arith.constant dense<0.000000e+00> : vector<16x128xf32>
    %19 = tpu.matmul %17, %18, %cst_14 {dimension_numbers = #tpu.dot_dimension_numbers<[1], [0], [0], [1], [0, 0, 1, 1], [], []>} : vector<16x32xbf16>, vector<32x128xbf16>, vector<16x128xf32> -> vector<16x128xf32>
    %c0_15 = arith.constant 0 : index
    %c0_16 = arith.constant 0 : index
    %20 = vector.load %arg7[%c0_15, %c0_16] : memref<1x128xf32, #tpu.memory_space<vmem>>, vector<1x128xf32>
    %21 = vector.broadcast %20 : vector<1x128xf32> to vector<16x128xf32>
    %22 = arith.addf %19, %21 : vector<16x128xf32>
    %23 = tpu.iota {dimensions = array<i32: 1>} : vector<16x128xi32>
    %c9_i32 = arith.constant 9 : i32
    %24 = vector.broadcast %c9_i32 : i32 to vector<16x128xi32>
    %25 = arith.cmpi slt, %23, %24 : vector<16x128xi32>
    %cst_17 = arith.constant 0xFF800000 : f32
    %26 = vector.broadcast %cst_17 : f32 to vector<16x128xf32>
    %27 = arith.select %25, %22, %26 : vector<16x128xi1>, vector<16x128xf32>
    %cst_18 = arith.constant dense<0xFF800000> : vector<16xf32>
    %28 = vector.multi_reduction <maximumf>, %27, %cst_18 [1] : vector<16x128xf32> to vector<16xf32>
    %29 = vector.shape_cast %28 : vector<16xf32> to vector<16x1xf32>
    %30 = vector.broadcast %29 : vector<16x1xf32> to vector<16x128xf32>
    %31 = arith.subf %27, %30 : vector<16x128xf32>
    %32 = math.exp %31 : vector<16x128xf32>
    %cst_19 = arith.constant dense<0.000000e+00> : vector<16xf32>
    %33 = vector.multi_reduction <add>, %32, %cst_19 [1] : vector<16x128xf32> to vector<16xf32>
    %34 = vector.shape_cast %33 : vector<16xf32> to vector<16x1xf32>
    %35 = tpu.reciprocal %34 : vector<16x1xf32> -> vector<16x1xf32>
    %36 = vector.broadcast %35 : vector<16x1xf32> to vector<16x128xf32>
    %37 = arith.mulf %32, %36 : vector<16x128xf32>
    %38 = math.tanh %22 : vector<16x128xf32>
    %39 = arith.select %25, %37, %38 : vector<16x128xi1>, vector<16x128xf32>
    %c0_20 = arith.constant 0 : index
    %c0_21 = arith.constant 0 : index
    %40 = vector.load %arg8[%c0_20, %c0_21] : memref<16x128xf32, #tpu.memory_space<vmem>>, vector<16x128xf32>
    tpu.vector_store %arg8[%c0_20, %c0_21], %39 {strides = array<i32>} : memref<16x128xf32, #tpu.memory_space<vmem>>, vector<16x128xf32>,
    return
  }
  func.func @transform_0(%arg0: i32) -> (i32, i32) {
    %c0_i32 = arith.constant 0 : i32
    %c0_i32_0 = arith.constant 0 : i32
    return %arg0, %c0_i32 : i32, i32
  }
  func.func @transform_1(%arg0: i32) -> (i32, i32) {
    %c0_i32 = arith.constant 0 : i32
    %c0_i32_0 = arith.constant 0 : i32
    %c0_i32_1 = arith.constant 0 : i32
    return %c0_i32, %c0_i32_0 : i32, i32
  }
  func.func @transform_2(%arg0: i32) -> (i32, i32) {
    %c0_i32 = arith.constant 0 : i32
    %c0_i32_0 = arith.constant 0 : i32
    %c0_i32_1 = arith.constant 0 : i32
    return %c0_i32, %c0_i32_0 : i32, i32
  }
  func.func @transform_3(%arg0: i32) -> (i32, i32) {
    %c0_i32 = arith.constant 0 : i32
    %c0_i32_0 = arith.constant 0 : i32
    %c0_i32_1 = arith.constant 0 : i32
    return %c0_i32, %c0_i32_0 : i32, i32
  }
  func.func @transform_4(%arg0: i32) -> (i32, i32) {
    %c0_i32 = arith.constant 0 : i32
    %c0_i32_0 = arith.constant 0 : i32
    %c0_i32_1 = arith.constant 0 : i32
    return %c0_i32, %c0_i32_0 : i32, i32
  }
  func.func @transform_5(%arg0: i32) -> (i32, i32) {
    %c0_i32 = arith.constant 0 : i32
    %c0_i32_0 = arith.constant 0 : i32
    %c0_i32_1 = arith.constant 0 : i32
    return %c0_i32, %c0_i32_0 : i32, i32
  }
  func.func @transform_6(%arg0: i32) -> (i32, i32) {
    %c0_i32 = arith.constant 0 : i32
    %c0_i32_0 = arith.constant 0 : i32
    %c0_i32_1 = arith.constant 0 : i32
    return %c0_i32, %c0_i32_0 : i32, i32
  }
  func.func @transform_7(%arg0: i32) -> (i32, i32) {
    %c0_i32 = arith.constant 0 : i32
    %c0_i32_0 = arith.constant 0 : i32
    return %arg0, %c0_i32 : i32, i32
  }
}

</mosaic_0001>

<llo_original>
// kernel: tpu_custom_call.1
$region0: #{tpu_custom_call.1}
  #allocation0 [shape = 'u32[]', space=smem, size = 0x4, offset = 0x4, fixed_abs, tag = 'smem constant byte address 0x4 - core index']
  #allocation1 [shape = 'u32[144,128]{1,0:T(1,128)}', space=vmem, size = 0x12000, scoped, tag = 'internal scratch']
  %s0 = inlined_call_operand.hbm [shape: f32[16,16], index: 0, kind: input, shape index: {}]
  %s1 = inlined_call_operand.hbm [shape: bf16[16,32], index: 1, kind: input, shape index: {}]
  %s2 = inlined_call_operand.vmem [shape: f32[1,32], index: 2, kind: input, shape index: {}]
  %s3 = inlined_call_operand.hbm [shape: bf16[32,32], index: 3, kind: input, shape index: {}]
  %s4 = inlined_call_operand.vmem [shape: f32[1,32], index: 4, kind: input, shape index: {}]
  %s5 = inlined_call_operand.vmem [shape: bf16[32,128], index: 5, kind: input, shape index: {}]
  %s6 = inlined_call_operand.vmem [shape: f32[1,128], index: 6, kind: input, shape index: {}]
  %s7 = inlined_call_operand.hbm [shape: f32[16,128], index: 7, kind: output, shape index: {}]
  %s8 = sld [smem:[#allocation0]]
  $region50: #{tpu_custom_call.1} parent=0
    _
  %s10 = ssub.s32 1, %s8
  %s11 = scalar_select 0, %s10, %s8
  $region1: #{tpu_custom_call.1} parent=0
    #allocation2 [shape = 'u8[8192]{0}', space=vmem, size = 0x2000, scoped, tag = 'input window, operand 0, single buffered']
    #allocation3 [shape = 's32[1]{0}', space=sflag, size = 0x4, scoped, tag = 'scoped memory for tpu_custom_call.1']
    #allocation4 [shape = 's32[1]{0}', space=sflag, size = 0x4, scoped, tag = 'scoped memory for tpu_custom_call.1']
    #allocation5 [shape = 'u8[4096]{0}', space=vmem, size = 0x1000, scoped, tag = 'input window, operand 1, single buffered']
    #allocation6 [shape = 's32[1]{0}', space=sflag, size = 0x4, scoped, tag = 'scoped memory for tpu_custom_call.1']
    #allocation7 [shape = 'u8[8192]{0}', space=vmem, size = 0x2000, scoped, tag = 'input window, operand 3, single buffered']
    #allocation8 [shape = 'u8[8192]{0}', space=vmem, size = 0x2000, scoped, tag = 'output window, operand 0, single buffered']
    %12 = vsyncpa [#allocation3], 0
    %13 = vsyncpa [#allocation6], 0
    %14 = vsyncpa [#allocation4], 0
    // Predicated region
    $region2: #{tpu_custom_call.1} parent=1 // pred_check
      _
    $region3: #{tpu_custom_call.1} parent=1 // pred_check_branch
      %16 = sbr.rel (0) target = $region5
    $region4: #{tpu_custom_call.1} parent=1 // pred_region
      %s18 = ssub.s32 256, 256
      %19 = vsyncadd [#allocation3], %s18
      %s20 = sshll.u32 [#allocation2], 4
      %s21 = int_to_ptr.vmem [resolvable:$true] %s20
      %26 = dma.hbm_to_vmem [thread:$0]  %s0, 256, %s21, [#allocation3], 128, 128, 8
    $region5: #{tpu_custom_call.1} parent=1 // pred_fallthru
      _
    // Predicated region
    $region6: #{tpu_custom_call.1} parent=1 // pred_check
      _
    $region7: #{tpu_custom_call.1} parent=1 // pred_check_branch
      %28 = sbr.rel (0) target = $region9
    $region8: #{tpu_custom_call.1} parent=1 // pred_region
      %s30 = ssub.s32 128, 128
      %31 = vsyncadd [#allocation6], %s30
      %s32 = sshll.u32 [#allocation5], 4
      %s33 = int_to_ptr.vmem [resolvable:$true] %s32
      %38 = dma.hbm_to_vmem [thread:$0]  %s1, 128, %s33, [#allocation6], 64, 64, 4
    $region9: #{tpu_custom_call.1} parent=1 // pred_fallthru
      _
    // Predicated region
    $region10: #{tpu_custom_call.1} parent=1 // pred_check
      _
    $region11: #{tpu_custom_call.1} parent=1 // pred_check_branch
      %40 = sbr.rel (0) target = $region13
    $region12: #{tpu_custom_call.1} parent=1 // pred_region
      _
    $region13: #{tpu_custom_call.1} parent=1 // pred_fallthru
      _
    // Predicated region
    $region14: #{tpu_custom_call.1} parent=1 // pred_check
      _
    $region15: #{tpu_custom_call.1} parent=1 // pred_check_branch
      %42 = sbr.rel (0) target = $region17
    $region16: #{tpu_custom_call.1} parent=1 // pred_region
      %s44 = ssub.s32 256, 256
      %45 = vsyncadd [#allocation6], %s44
      %s46 = sshll.u32 [#allocation7], 4
      %s47 = int_to_ptr.vmem [resolvable:$true] %s46
      %52 = dma.hbm_to_vmem [thread:$0]  %s3, 256, %s47, [#allocation6], 64, 64, 4
    $region17: #{tpu_custom_call.1} parent=1 // pred_fallthru
      _
    // Predicated region
    $region18: #{tpu_custom_call.1} parent=1 // pred_check
      _
    $region19: #{tpu_custom_call.1} parent=1 // pred_check_branch
      %54 = sbr.rel (0) target = $region21
    $region20: #{tpu_custom_call.1} parent=1 // pred_region
      _
    $region21: #{tpu_custom_call.1} parent=1 // pred_fallthru
      _
    // Predicated region
    $region22: #{tpu_custom_call.1} parent=1 // pred_check
      _
    $region23: #{tpu_custom_call.1} parent=1 // pred_check_branch
      %56 = sbr.rel (0) target = $region25
    $region24: #{tpu_custom_call.1} parent=1 // pred_region
      _
    $region25: #{tpu_custom_call.1} parent=1 // pred_fallthru
      _
    // Predicated region
    $region26: #{tpu_custom_call.1} parent=1 // pred_check
      _
    $region27: #{tpu_custom_call.1} parent=1 // pred_check_branch
      %58 = sbr.rel (0) target = $region29
    $region28: #{tpu_custom_call.1} parent=1 // pred_region
      _
    $region29: #{tpu_custom_call.1} parent=1 // pred_fallthru
      _
    // Predicated region
    $region30: #{tpu_custom_call.1} parent=1 // pred_check
      _
    $region31: #{tpu_custom_call.1} parent=1 // pred_check_branch
      %60 = sbr.rel (0) target = $region33
    $region32: #{tpu_custom_call.1} parent=1 // pred_region
      %61 = dma.done [#allocation3], 256
    $region33: #{tpu_custom_call.1} parent=1 // pred_fallthru
      _
    // Predicated region
    $region34: #{tpu_custom_call.1} parent=1 // pred_check
      _
    $region35: #{tpu_custom_call.1} parent=1 // pred_check_branch
      %63 = sbr.rel (0) target = $region37
    $region36: #{tpu_custom_call.1} parent=1 // pred_region
      %64 = dma.done [#allocation6], 128
    $region37: #{tpu_custom_call.1} parent=1 // pred_fallthru
      _
    // Predicated region
    $region38: #{tpu_custom_call.1} parent=1 // pred_check
      _
    $region39: #{tpu_custom_call.1} parent=1 // pred_check_branch
      %66 = sbr.rel (0) target = $region41
    $region40: #{tpu_custom_call.1} parent=1 // pred_region
      %67 = dma.done [#allocation6], 256
    $region41: #{tpu_custom_call.1} parent=1 // pred_fallthru
      _
    %v69 = vld [vmem:[#allocation2] sm:$0xff]
    %v70 = vld [vmem:[#allocation2 + $0x8] sm:$0xff]
    %v71 = vpack.c.bf16 %v70, %v69
    %v72 = vld [vmem:[#allocation5] sm:$0xf]
    %v73 = vld [vmem:[#allocation5 + $0x4] sm:$0xf]
    %v74 = vld [vmem:[%s2] sm:$0x1]
    %v76 = vlaneseq
    %v77 = vshrl.u32 %v76, 7
    %v78 = vsub.s32 0, %v77
    %v79 = vrot.slane %v74, %v78
    %v83 = vunpack.c.l.b16 %v72
    %v84 = vunpack.c.l.b16 %v73
    %v85 = vpack.c.b16 %v84, %v83
    %vm87 = vcmask 130048
    %v89 = vsel %vm87, %v71, 0
    %91 = vmatprep.subr.bf16.mxu0 0
    %92 = vmatpush1.bf16.msra.mxu0 %v85
    %93 = vmatprep.subr.bf16.mxu0 0
    %94 = vmatpush1.bf16.msra.mxu0 0
    %95 = vmatprep.subr.bf16.mxu0 0
    %96 = vmatpush1.bf16.msra.mxu0 0
    %97 = vmatprep.subr.bf16.mxu0 0
    %98 = vmatpush1.bf16.msra.mxu0 0
    %99 = vmatprep.subr.bf16.mxu0 0
    %100 = vmatpush1.bf16.msra.mxu0 0
    %101 = vmatprep.subr.bf16.mxu0 0
    %102 = vmatpush1.bf16.msra.mxu0 0
    %103 = vmatprep.subr.bf16.mxu0 0
    %104 = vmatpush1.bf16.msra.mxu0 0
    %105 = vmatprep.subr.bf16.mxu0 0
    %106 = vmatpush1.bf16.msra.mxu0 0
    %107 = vmatprep.subr.bf16.mxu0 0
    %108 = vmatpush1.bf16.msra.mxu0 0
    %109 = vmatprep.subr.bf16.mxu0 0
    %110 = vmatpush1.bf16.msra.mxu0 0
    %111 = vmatprep.subr.bf16.mxu0 0
    %112 = vmatpush1.bf16.msra.mxu0 0
    %113 = vmatprep.subr.bf16.mxu0 0
    %114 = vmatpush1.bf16.msra.mxu0 0
    %115 = vmatprep.subr.bf16.mxu0 0
    %116 = vmatpush1.bf16.msra.mxu0 0
    %117 = vmatprep.subr.bf16.mxu0 0
    %118 = vmatpush1.bf16.msra.mxu0 0
    %119 = vmatprep.subr.bf16.mxu0 0
    %120 = vmatpush1.bf16.msra.mxu0 0
    %121 = vmatprep.subr.bf16.mxu0 0
    %122 = vmatpush1.bf16.msra.mxu0 0
    %123 = vmatprep.mubr.bf16.mxu0 0
    %124 = vmatmul.mubr.bf16.gmra.mrb[0].mxu0 %v89
    %v125 = vpop.f32.mrb[0].mxu0
    %v126 = vadd.f32 %v79, %v125
    %v127 = vpop.f32.mrb[0].mxu0
    %v128 = vpop.f32.mrb[0].mxu0
    %v129 = vadd.f32 %v79, %v128
    %v130 = vpop.f32.mrb[0].mxu0
    %131 = vdwg.mxu0
    %v132 = vmax.f32 %v126, 0.0
    %v133 = vmax.f32 %v129, 0.0
    %v134 = vpack.c.bf16 %v133, %v132
    %v135 = vld [vmem:[#allocation7] sm:$0xf]
    %v136 = vld [vmem:[#allocation7 + $0x4] sm:$0xf]
    %v137 = vld [vmem:[#allocation7 + $0x8] sm:$0xf]
    %v138 = vld [vmem:[#allocation7 + $0xc] sm:$0xf]
    %v139 = vld [vmem:[%s4] sm:$0x1]
    %v141 = vlaneseq
    %v142 = vshrl.u32 %v141, 7
    %v143 = vsub.s32 0, %v142
    %v144 = vrot.slane %v139, %v143
    %v150 = vunpack.c.l.b16 %v135
    %v151 = vunpack.c.l.b16 %v136
    %v152 = vunpack.c.l.b16 %v137
    %v153 = vunpack.c.l.b16 %v138
    %v154 = vpack.c.b16 %v151, %v150
    %v155 = vpack.c.b16 %v153, %v152
    %vm158 = vcmask 261120
    %v160 = vsel %vm158, %v134, 0
    %162 = vmatprep.subr.bf16.mxu0 0
    %163 = vmatpush1.bf16.msra.mxu0 %v154
    %164 = vmatprep.subr.bf16.mxu0 0
    %165 = vmatpush1.bf16.msra.mxu0 %v155
    %166 = vmatprep.subr.bf16.mxu0 0
    %167 = vmatpush1.bf16.msra.mxu0 0
    %168 = vmatprep.subr.bf16.mxu0 0
    %169 = vmatpush1.bf16.msra.mxu0 0
    %170 = vmatprep.subr.bf16.mxu0 0
    %171 = vmatpush1.bf16.msra.mxu0 0
    %172 = vmatprep.subr.bf16.mxu0 0
    %173 = vmatpush1.bf16.msra.mxu0 0
    %174 = vmatprep.subr.bf16.mxu0 0
    %175 = vmatpush1.bf16.msra.mxu0 0
    %176 = vmatprep.subr.bf16.mxu0 0
    %177 = vmatpush1.bf16.msra.mxu0 0
    %178 = vmatprep.subr.bf16.mxu0 0
    %179 = vmatpush1.bf16.msra.mxu0 0
    %180 = vmatprep.subr.bf16.mxu0 0
    %181 = vmatpush1.bf16.msra.mxu0 0
    %182 = vmatprep.subr.bf16.mxu0 0
    %183 = vmatpush1.bf16.msra.mxu0 0
    %184 = vmatprep.subr.bf16.mxu0 0
    %185 = vmatpush1.bf16.msra.mxu0 0
    %186 = vmatprep.subr.bf16.mxu0 0
    %187 = vmatpush1.bf16.msra.mxu0 0
    %188 = vmatprep.subr.bf16.mxu0 0
    %189 = vmatpush1.bf16.msra.mxu0 0
    %190 = vmatprep.subr.bf16.mxu0 0
    %191 = vmatpush1.bf16.msra.mxu0 0
    %192 = vmatprep.subr.bf16.mxu0 0
    %193 = vmatpush1.bf16.msra.mxu0 0
    %194 = vmatprep.mubr.bf16.mxu0 0
    %195 = vmatmul.mubr.bf16.gmra.mrb[0].mxu0 %v160
    %v196 = vpop.f32.mrb[0].mxu0
    %v197 = vadd.f32 %v144, %v196
    %v198 = vpop.f32.mrb[0].mxu0
    %v199 = vpop.f32.mrb[0].mxu0
    %v200 = vadd.f32 %v144, %v199
    %v201 = vpop.f32.mrb[0].mxu0
    %202 = vdwg.mxu0
    %v203 = vmax.f32 %v197, 0.0
    %v204 = vmax.f32 %v200, 0.0
    %v205 = vpack.c.bf16 %v204, %v203
    %v206 = vld [vmem:[%s5] sm:$0xf]
    %v207 = vld [vmem:[%s5 + $0x4] sm:$0xf]
    %v208 = vld [vmem:[%s5 + $0x8] sm:$0xf]
    %v209 = vld [vmem:[%s5 + $0xc] sm:$0xf]
    %v210 = vld [vmem:[%s6] sm:$0x1]
    %v212 = vlaneseq
    %v213 = vshrl.u32 %v212, 7
    %v214 = vsub.s32 0, %v213
    %v215 = vrot.slane %v210, %v214
    %v221 = vunpack.c.l.b16 %v206
    %v222 = vunpack.c.l.b16 %v207
    %v223 = vunpack.c.l.b16 %v208
    %v224 = vunpack.c.l.b16 %v209
    %v225 = vpack.c.b16 %v222, %v221
    %v226 = vpack.c.b16 %v224, %v223
    %v230 = vsel %vm158, %v205, 0
    %232 = vmatprep.subr.bf16.mxu0 0
    %233 = vmatpush1.bf16.msra.mxu0 %v225
    %234 = vmatprep.subr.bf16.mxu0 0
    %235 = vmatpush1.bf16.msra.mxu0 %v226
    %236 = vmatprep.subr.bf16.mxu0 0
    %237 = vmatpush1.bf16.msra.mxu0 0
    %238 = vmatprep.subr.bf16.mxu0 0
    %239 = vmatpush1.bf16.msra.mxu0 0
    %240 = vmatprep.subr.bf16.mxu0 0
    %241 = vmatpush1.bf16.msra.mxu0 0
    %242 = vmatprep.subr.bf16.mxu0 0
    %243 = vmatpush1.bf16.msra.mxu0 0
    %244 = vmatprep.subr.bf16.mxu0 0
    %245 = vmatpush1.bf16.msra.mxu0 0
    %246 = vmatprep.subr.bf16.mxu0 0
    %247 = vmatpush1.bf16.msra.mxu0 0
    %248 = vmatprep.subr.bf16.mxu0 0
    %249 = vmatpush1.bf16.msra.mxu0 0
    %250 = vmatprep.subr.bf16.mxu0 0
    %251 = vmatpush1.bf16.msra.mxu0 0
    %252 = vmatprep.subr.bf16.mxu0 0
    %253 = vmatpush1.bf16.msra.mxu0 0
    %254 = vmatprep.subr.bf16.mxu0 0
    %255 = vmatpush1.bf16.msra.mxu0 0
    %256 = vmatprep.subr.bf16.mxu0 0
    %257 = vmatpush1.bf16.msra.mxu0 0
    %258 = vmatprep.subr.bf16.mxu0 0
    %259 = vmatpush1.bf16.msra.mxu0 0
    %260 = vmatprep.subr.bf16.mxu0 0
    %261 = vmatpush1.bf16.msra.mxu0 0
    %262 = vmatprep.subr.bf16.mxu0 0
    %263 = vmatpush1.bf16.msra.mxu0 0
    %264 = vmatprep.mubr.bf16.mxu0 0
    %265 = vmatmul.mubr.bf16.gmra.mrb[0].mxu0 %v230
    %v266 = vpop.f32.mrb[0].mxu0
    %v267 = vadd.f32 %v215, %v266
    %v268 = vpop.f32.mrb[0].mxu0
    %v269 = vpop.f32.mrb[0].mxu0
    %v270 = vadd.f32 %v215, %v269
    %v271 = vpop.f32.mrb[0].mxu0
    %272 = vdwg.mxu0
    %v273 = vlaneseq
    %v274 = vand.u32 %v273, 127
    %vm275 = vcmp.lt.s32.totalorder %v274, 9
    %v276 = vsel %vm275, %v267, -inf
    %v277 = vsel %vm275, %v270, -inf
    %278 = vmax.xlane.f32.xlu0 %v276
    %v279 = vpop.xlane.xlu0 %278
    %280 = vmax.xlane.f32.xlu0 %v277
    %v281 = vpop.xlane.xlu0 %280
    %v282 = vsub.f32 %v276, %v279
    %v283 = vsub.f32 %v277, %v281
    %v284 = vmul.f32 %v282, 1.442695
    %v285 = vpow.pop %v284
    %v286 = vmul.f32 %v283, 1.442695
    %v287 = vpow.pop %v286
    %288 = vadd.xlane.f32.xlu0 %v285
    %v289 = vpop.xlane.xlu0 %288
    %290 = vadd.xlane.f32.xlu0 %v287
    %v291 = vpop.xlane.xlu0 %290
    %v292 = vrcp.pop %v289
    %v293 = vrcp.pop %v291
    %v294 = vmul.f32 %v285, %v292
    %v295 = vmul.f32 %v287, %v293
    %v296 = vtanh.pop %v267
    %v297 = vtanh.pop %v270
    %v298 = vsel %vm275, %v294, %v296
    %v299 = vsel %vm275, %v295, %v297
    %300 = vst [vmem:[#allocation8] sm:$0xff] %v298
    %301 = vst [vmem:[#allocation8 + $0x8] sm:$0xff] %v299
    // Predicated region
    $region42: #{tpu_custom_call.1} parent=1 // pred_check
      _
    $region43: #{tpu_custom_call.1} parent=1 // pred_check_branch
      %303 = sbr.rel (0) target = $region45
    $region44: #{tpu_custom_call.1} parent=1 // pred_region
      %s305 = ssub.s32 256, 256
      %306 = vsyncadd [#allocation4], %s305
      %s307 = sshll.u32 [#allocation8], 4
      %s308 = int_to_ptr.vmem [resolvable:$true] %s307
      %313 = dma.vmem_to_hbm [thread:$0]  %s308, 256, %s7, [#allocation4], 128, 128, 8
    $region45: #{tpu_custom_call.1} parent=1 // pred_fallthru
      _
    // Predicated region
    $region46: #{tpu_custom_call.1} parent=1 // pred_check
      _
    $region47: #{tpu_custom_call.1} parent=1 // pred_check_branch
      %315 = sbr.rel (0) target = $region49
    $region48: #{tpu_custom_call.1} parent=1 // pred_region
      %316 = dma.done [#allocation4], 256
    $region49: #{tpu_custom_call.1} parent=1 // pred_fallthru
      _
    %317 = vsyncpa [#allocation3], 1
    %318 = vsyncpa [#allocation6], 1
    %319 = vsyncpa [#allocation4], 1

</llo_original>
